<compile_context>
chip_gen: v7x
topology: tpu7x:2x2x1
jax: 0.10.0
libtpu: 0.0.40
codegen_flags: <defaults>
</compile_context>

<pallas_src>
import functools

import jax
import jax.numpy as jnp
from jax import lax
from jax.experimental import pallas as pl
from jax.experimental.pallas import tpu as pltpu


def self_attention_kernel(x_ref, wq_ref, wk_ref, wvg_ref, o_ref, f_sc, h_sc,
                          *, tn, l_real, bf16_softmax):
    # x_ref  : (1, C, Lp)  full row extent of the current batch element
    # wq_ref : (Cq, C)     query 1x1-conv weight
    # wk_ref : (Cq, C)     key   1x1-conv weight
    # wvg_ref: (C, C)      gamma * value 1x1-conv weight
    # o_ref  : (1, C, TN)  output column tile
    # f_sc   : (Cq, Lp) f32   cached query projection (per batch element)
    # h_sc   : (C,  Lp) bf16  cached gamma*value projection (per batch element)
    j = pl.program_id(1)

    # --- per-batch-element projection cache, amortized over the j axis -----
    @pl.when(j == 0)
    def _():
        xf = x_ref[0]                                               # (C, Lp)
        f_sc[...] = jnp.dot(wq_ref[...], xf,
                            preferred_element_type=jnp.float32)     # (Cq, Lp)
        h_sc[...] = jnp.dot(wvg_ref[...], xf,
                            preferred_element_type=jnp.float32
                            ).astype(jnp.bfloat16)                  # (C, Lp)

    # --- column tile of x, sliced lane-aligned from the resident block -----
    start = pl.multiple_of(j * tn, 128)
    xc = x_ref[0, :, pl.ds(start, tn)]                              # (C, TN)

    # Key projection only needs this column tile.
    g = jnp.dot(wk_ref[...], xc, preferred_element_type=jnp.float32)  # (Cq, TN)

    # s[l, n] = sum_q f[q, l] * g[q, n]   (== torch.bmm(f^T, g) column tile)
    # Kept in f32: the logits feed exp(), which would amplify bf16 rounding.
    s = lax.dot_general(f_sc[...], g, (((0,), (0,)), ((), ())),
                        preferred_element_type=jnp.float32)         # (Lp, TN)

    lp = s.shape[0]
    if l_real != lp:
        # Static Python condition: only emitted when L was zero-padded to Lp.
        # One (Lp,1) broadcast add; padded rows drop out of max, sum and the
        # value matmul (exp(-1e30 - max) == 0).
        rows = lax.broadcasted_iota(jnp.int32, (lp, 1), 0)
        s = s + jnp.where(rows < l_real, 0.0, -1e30)

    # Per-column softmax (dim=1 of the (L, L) logits); normalization deferred.
    s = s - jnp.max(s, axis=0, keepdims=True)
    if bf16_softmax:
        # v6e/v7x path: bf16 EUP/VPU; col_sum still accumulated in f32.
        e = jnp.exp(s.astype(jnp.bfloat16))                         # (Lp, TN)
        col_sum = jnp.sum(e, axis=0, keepdims=True, dtype=jnp.float32)
    else:
        e_f32 = jnp.exp(s)
        col_sum = jnp.sum(e_f32, axis=0, keepdims=True)             # (1, TN)
        e = e_f32.astype(jnp.bfloat16)

    # Value matmul on bf16 operands, f32 MXU accumulation (K = Lp).
    attn_un = jnp.dot(h_sc[...], e, preferred_element_type=jnp.float32)  # (C, TN)
    inv = pl.reciprocal(col_sum, approx=True)                       # (1, TN) EUP

    # gamma is already folded into h_sc; residual is the exact f32 x tile.
    o_ref[0] = attn_un * inv + xc


def _vmem_capacity_bytes():
    """Physical VMEM capacity of the attached TPU (fallback: 64 MiB, v7x)."""
    try:
        cap = int(pltpu.get_tpu_info().vmem_capacity_bytes)
        if cap > 0:
            return cap
    except Exception:
        pass
    return 64 * 1024 * 1024


def _pick_tn(l_pad, c, cq, budget_bytes):
    """Largest multiple-of-128 divisor of l_pad whose live-VMEM estimate fits."""
    n_blocks = l_pad // 128
    # Bytes that do not scale with TN: x full-row double buffer (f32),
    # f scratch (f32), h scratch (bf16).
    fixed = 2 * c * l_pad * 4 + cq * l_pad * 4 + c * l_pad * 2
    best = 128
    for nb in range(1, n_blocks + 1):
        if n_blocks % nb:
            continue
        tn = nb * 128
        # ~3 live f32 (Lp, TN) slabs (s, e, bf16 copy counted conservatively)
        # + double-buffered output tile.
        live = fixed + 3 * l_pad * tn * 4 + 2 * c * tn * 4
        if live <= budget_bytes:
            best = tn
    return best


def self_attention(x_nchw, wq, wk, wv, gamma, *, softmax_in_bf16=False):
    """x_nchw: (B, C, H, W) float32.  Returns the same shape."""
    B, C, H, W = x_nchw.shape
    L = H * W
    Cq = wq.shape[0]

    x = x_nchw.reshape(B, C, L).astype(jnp.float32)
    # Pad L to a multiple of 128 for lane-dense stores / clean (8,128) tiling;
    # padded rows are masked out of the softmax inside the kernel, padded
    # output columns are cropped below.
    Lp = ((L + 127) // 128) * 128
    if Lp != L:
        x = jnp.pad(x, ((0, 0), (0, 0), (0, Lp - L)))

    cap = _vmem_capacity_bytes()
    vmem_limit = int(cap * 0.85)             # ~108 MiB on 128 MiB parts, ~54 MiB on v7x
    TN = _pick_tn(Lp, C, Cq, int(vmem_limit * 0.8))
    grid = (B, Lp // TN)

    wq = jnp.asarray(wq, jnp.float32)
    wk = jnp.asarray(wk, jnp.float32)
    # Fold gamma into the value weight (exact: gamma is linear in that path).
    wvg = jnp.asarray(gamma, jnp.float32).reshape(()) * jnp.asarray(wv, jnp.float32)

    kernel = functools.partial(self_attention_kernel, tn=TN, l_real=L,
                               bf16_softmax=softmax_in_bf16)

    out = pl.pallas_call(
        kernel,
        out_shape=jax.ShapeDtypeStruct((B, C, Lp), jnp.float32),
        grid_spec=pltpu.PrefetchScalarGridSpec(
            num_scalar_prefetch=0,
            grid=grid,
            in_specs=[
                # Full-row x block: index depends only on b, so it stays
                # resident across the whole j loop.  (pipeline_mode=
                # pl.Buffered(1) would drop its second buffer; left at the
                # default — the VMEM budget above already counts 2 buffers.)
                pl.BlockSpec((1, C, Lp), lambda b, j: (b, 0, 0)),
                pl.BlockSpec((Cq, C), lambda b, j: (0, 0)),         # wq
                pl.BlockSpec((Cq, C), lambda b, j: (0, 0)),         # wk
                pl.BlockSpec((C, C), lambda b, j: (0, 0)),          # gamma*wv
            ],
            out_specs=pl.BlockSpec((1, C, TN), lambda b, j: (b, 0, j)),
            scratch_shapes=[
                pltpu.VMEM((Cq, Lp), jnp.float32),    # cached f = Wq @ x
                pltpu.VMEM((C, Lp), jnp.bfloat16),    # cached gamma*Wv @ x
            ],
        ),
        compiler_params=pltpu.CompilerParams(
            # j must be sequential ("arbitrary"): the projection scratch
            # computed at j == 0 is reused by later column tiles.
            dimension_semantics=("parallel", "arbitrary"),
            vmem_limit_bytes=vmem_limit,
        ),
    )(x, wq, wk, wvg)

    if Lp != L:
        out = out[:, :, :L]
    return out.reshape(B, C, H, W)


def reference(x_nchw, wq, wk, wv, gamma):
    B, C, H, W = x_nchw.shape
    x = x_nchw.reshape(B, C, H * W)
    f = jnp.einsum('qc,bcl->bql', wq, x)
    g = jnp.einsum('qc,bcl->bql', wk, x)
    h = jnp.einsum('vc,bcl->bvl', wv, x)
    s = jnp.einsum('bql,bqm->blm', f, g)
    beta = jax.nn.softmax(s, axis=1)          # dim=1 of (B, L, L)
    o = gamma * jnp.einsum('bvl,blm->bvm', h, beta) + x
    return o.reshape(B, C, H, W)


if __name__ == "__main__":
    key = jax.random.PRNGKey(0)
    B, C, H, W = 2, 4, 16, 16          # n_channels = 4
    div = 1                            # Cq = C // div
    Cq = max(C // div, 1)

    k_x, k_q, k_k, k_v = jax.random.split(key, 4)
    x = jax.random.normal(k_x, (B, C, H, W), jnp.float32)

    # Conv1d(ni, no, ks=1) weight shape (no, ni, 1) -> squeeze to (no, ni);
    # kaiming_normal_ (fan_in mode, gain sqrt(2)): std = sqrt(2 / ni).
    def kaiming(k, no, ni):
        return jax.random.normal(k, (no, ni), jnp.float32) * jnp.sqrt(2.0 / ni)

    wq = kaiming(k_q, Cq, C)
    wk = kaiming(k_k, Cq, C)
    wv = kaiming(k_v, C, C)
    # PyTorch inits gamma to 0.0; use a nonzero deterministic value here so
    # the attention path actually contributes to the output.
    gamma = 0.5

    out = jax.block_until_ready(self_attention(x, wq, wk, wv, gamma))
    ref = reference(x, wq, wk, wv, gamma)
    assert out.shape == (B, C, H, W)
    # Tolerance relaxed vs. pure f32: the value matmul runs on bf16 operands
    # (f32 accumulation) and the softmax denom uses the EUP approx reciprocal.
    assert jnp.allclose(out, ref, atol=2e-2, rtol=2e-2)
    print("KERNEL_OK")
</pallas_src>

<mosaic_0001>
module attributes {stable_mosaic.version = 11 : i64} {
  func.func @self_attention_kernel(%arg0: i32, %arg1: i32, %arg2: memref<1x4x256xf32, #tpu.memory_space<vmem>>, %arg3: memref<4x4xf32, #tpu.memory_space<vmem>>, %arg4: memref<4x4xf32, #tpu.memory_space<vmem>>, %arg5: memref<4x4xf32, #tpu.memory_space<vmem>>, %arg6: memref<1x4x256xf32, #tpu.memory_space<vmem>>, %arg7: memref<4x256xf32, #tpu.memory_space<vmem>>, %arg8: memref<4x256xbf16, #tpu.memory_space<vmem>>) attributes {dimension_semantics = [#tpu.dimension_semantics<parallel>, #tpu.dimension_semantics<arbitrary>], iteration_bounds = array<i64: 2, 1>, scalar_prefetch = 0 : i64, scratch_operands = 2 : i64, tpu.core_type = #tpu.core_type<tc>, window_params = [{transform_indices = @transform_0, window_bounds = array<i64: 1, 4, 256>}, {pipeline_mode = #tpu.pipeline_mode<synchronous>, transform_indices = @transform_1, window_bounds = array<i64: 4, 4>}, {pipeline_mode = #tpu.pipeline_mode<synchronous>, transform_indices = @transform_2, window_bounds = array<i64: 4, 4>}, {pipeline_mode = #tpu.pipeline_mode<synchronous>, transform_indices = @transform_3, window_bounds = array<i64: 4, 4>}, {transform_indices = @transform_4, window_bounds = array<i64: 1, 4, 256>}]} {
    %c0_i32 = arith.constant 0 : i32
    %0 = arith.cmpi eq, %arg1, %c0_i32 : i32
    %1 = arith.extui %0 : i1 to i32
    %c0_i32_0 = arith.constant 0 : i32
    %2 = arith.cmpi ne, %1, %c0_i32_0 : i32
    scf.if %2 {
      %c0_15 = arith.constant 0 : index
      %c0_16 = arith.constant 0 : index
      %c0_17 = arith.constant 0 : index
      %29 = vector.load %arg2[%c0_15, %c0_16, %c0_17] : memref<1x4x256xf32, #tpu.memory_space<vmem>>, vector<1x4x256xf32>
      %30 = vector.shape_cast %29 : vector<1x4x256xf32> to vector<4x256xf32>
      %c0_18 = arith.constant 0 : index
      %c0_19 = arith.constant 0 : index
      %31 = vector.load %arg3[%c0_18, %c0_19] : memref<4x4xf32, #tpu.memory_space<vmem>>, vector<4x4xf32>
      %cst_20 = arith.constant dense<0.000000e+00> : vector<4x256xf32>
      %32 = tpu.matmul %31, %30, %cst_20 {dimension_numbers = #tpu.dot_dimension_numbers<[1], [0], [0], [1], [0, 0, 1, 1], [], []>} : vector<4x4xf32>, vector<4x256xf32>, vector<4x256xf32> -> vector<4x256xf32>
      %c0_21 = arith.constant 0 : index
      %c0_22 = arith.constant 0 : index
      %33 = vector.load %arg7[%c0_21, %c0_22] : memref<4x256xf32, #tpu.memory_space<vmem>>, vector<4x256xf32>
      tpu.vector_store %arg7[%c0_21, %c0_22], %32 {strides = array<i32>} : memref<4x256xf32, #tpu.memory_space<vmem>>, vector<4x256xf32>,
      %c0_23 = arith.constant 0 : index
      %c0_24 = arith.constant 0 : index
      %34 = vector.load %arg5[%c0_23, %c0_24] : memref<4x4xf32, #tpu.memory_space<vmem>>, vector<4x4xf32>
      %cst_25 = arith.constant dense<0.000000e+00> : vector<4x256xf32>
      %35 = tpu.matmul %34, %30, %cst_25 {dimension_numbers = #tpu.dot_dimension_numbers<[1], [0], [0], [1], [0, 0, 1, 1], [], []>} : vector<4x4xf32>, vector<4x256xf32>, vector<4x256xf32> -> vector<4x256xf32>
      %36 = arith.truncf %35 : vector<4x256xf32> to vector<4x256xbf16>
      %c0_26 = arith.constant 0 : index
      %c0_27 = arith.constant 0 : index
      %37 = vector.load %arg8[%c0_26, %c0_27] : memref<4x256xbf16, #tpu.memory_space<vmem>>, vector<4x256xbf16>
      tpu.vector_store %arg8[%c0_26, %c0_27], %36 {strides = array<i32>} : memref<4x256xbf16, #tpu.memory_space<vmem>>, vector<4x256xbf16>,
    } else {
    }
    %c256_i32 = arith.constant 256 : i32
    %3 = arith.muli %arg1, %c256_i32 : i32
    %4 = tpu.assume_multiple %3, 128 : i32
    %c0 = arith.constant 0 : index
    %c0_1 = arith.constant 0 : index
    %5 = arith.index_cast %4 : i32 to index
    %6 = vector.load %arg2[%c0, %c0_1, %5] : memref<1x4x256xf32, #tpu.memory_space<vmem>>, vector<1x4x256xf32>
    %7 = vector.shape_cast %6 : vector<1x4x256xf32> to vector<4x256xf32>
    %c0_2 = arith.constant 0 : index
    %c0_3 = arith.constant 0 : index
    %8 = vector.load %arg4[%c0_2, %c0_3] : memref<4x4xf32, #tpu.memory_space<vmem>>, vector<4x4xf32>
    %cst = arith.constant dense<0.000000e+00> : vector<4x256xf32>
    %9 = tpu.matmul %8, %7, %cst {dimension_numbers = #tpu.dot_dimension_numbers<[1], [0], [0], [1], [0, 0, 1, 1], [], []>} : vector<4x4xf32>, vector<4x256xf32>, vector<4x256xf32> -> vector<4x256xf32>
    %c0_4 = arith.constant 0 : index
    %c0_5 = arith.constant 0 : index
    %10 = vector.load %arg7[%c0_4, %c0_5] : memref<4x256xf32, #tpu.memory_space<vmem>>, vector<4x256xf32>
    %cst_6 = arith.constant dense<0.000000e+00> : vector<256x256xf32>
    %11 = tpu.matmul %10, %9, %cst_6 {dimension_numbers = #tpu.dot_dimension_numbers<[0], [0], [1], [1], [0, 1, 1, 1], [], []>} : vector<4x256xf32>, vector<4x256xf32>, vector<256x256xf32> -> vector<256x256xf32>
    %cst_7 = arith.constant dense<0xFF800000> : vector<256xf32>
    %12 = vector.multi_reduction <maximumf>, %11, %cst_7 [0] : vector<256x256xf32> to vector<256xf32>
    %13 = vector.shape_cast %12 : vector<256xf32> to vector<1x256xf32>
    %14 = vector.broadcast %13 : vector<1x256xf32> to vector<256x256xf32>
    %15 = arith.subf %11, %14 : vector<256x256xf32>
    %16 = math.exp %15 : vector<256x256xf32>
    %cst_8 = arith.constant dense<0.000000e+00> : vector<256xf32>
    %17 = vector.multi_reduction <add>, %16, %cst_8 [0] : vector<256x256xf32> to vector<256xf32>
    %18 = vector.shape_cast %17 : vector<256xf32> to vector<1x256xf32>
    %19 = arith.truncf %16 : vector<256x256xf32> to vector<256x256xbf16>
    %c0_9 = arith.constant 0 : index
    %c0_10 = arith.constant 0 : index
    %20 = vector.load %arg8[%c0_9, %c0_10] : memref<4x256xbf16, #tpu.memory_space<vmem>>, vector<4x256xbf16>
    %cst_11 = arith.constant dense<0.000000e+00> : vector<4x256xf32>
    %21 = tpu.matmul %20, %19, %cst_11 {dimension_numbers = #tpu.dot_dimension_numbers<[1], [0], [0], [1], [0, 0, 1, 1], [], []>} : vector<4x256xbf16>, vector<256x256xbf16>, vector<4x256xf32> -> vector<4x256xf32>
    %22 = tpu.reciprocal %18 {approx = true} : vector<1x256xf32> -> vector<1x256xf32>
    %23 = vector.broadcast %22 : vector<1x256xf32> to vector<4x256xf32>
    %24 = arith.mulf %21, %23 : vector<4x256xf32>
    %25 = arith.addf %24, %7 : vector<4x256xf32>
    %c0_12 = arith.constant 0 : index
    %c0_13 = arith.constant 0 : index
    %c0_14 = arith.constant 0 : index
    %26 = vector.load %arg6[%c0_12, %c0_13, %c0_14] : memref<1x4x256xf32, #tpu.memory_space<vmem>>, vector<1x4x256xf32>
    %27 = vector.shape_cast %26 : vector<1x4x256xf32> to vector<4x256xf32>
    %28 = vector.shape_cast %25 : vector<4x256xf32> to vector<1x4x256xf32>
    tpu.vector_store %arg6[%c0_12, %c0_13, %c0_14], %28 {strides = array<i32>} : memref<1x4x256xf32, #tpu.memory_space<vmem>>, vector<1x4x256xf32>,
    return
  }
  func.func @transform_0(%arg0: i32, %arg1: i32) -> (i32, i32, i32) {
    %c0_i32 = arith.constant 0 : i32
    %c0_i32_0 = arith.constant 0 : i32
    %c0_i32_1 = arith.constant 0 : i32
    return %arg0, %c0_i32, %c0_i32_0 : i32, i32, i32
  }
  func.func @transform_1(%arg0: i32, %arg1: i32) -> (i32, i32) {
    %c0_i32 = arith.constant 0 : i32
    %c0_i32_0 = arith.constant 0 : i32
    %c0_i32_1 = arith.constant 0 : i32
    return %c0_i32, %c0_i32_0 : i32, i32
  }
  func.func @transform_2(%arg0: i32, %arg1: i32) -> (i32, i32) {
    %c0_i32 = arith.constant 0 : i32
    %c0_i32_0 = arith.constant 0 : i32
    %c0_i32_1 = arith.constant 0 : i32
    return %c0_i32, %c0_i32_0 : i32, i32
  }
  func.func @transform_3(%arg0: i32, %arg1: i32) -> (i32, i32) {
    %c0_i32 = arith.constant 0 : i32
    %c0_i32_0 = arith.constant 0 : i32
    %c0_i32_1 = arith.constant 0 : i32
    return %c0_i32, %c0_i32_0 : i32, i32
  }
  func.func @transform_4(%arg0: i32, %arg1: i32) -> (i32, i32, i32) {
    %c0_i32 = arith.constant 0 : i32
    %c0_i32_0 = arith.constant 0 : i32
    return %arg0, %c0_i32, %arg1 : i32, i32, i32
  }
}

</mosaic_0001>

<llo_original>
// kernel: tpu_custom_call.1
$region0: #{tpu_custom_call.1}
  #allocation0 [shape = 'u32[]', space=smem, size = 0x4, offset = 0x4, fixed_abs, tag = 'smem constant byte address 0x4 - core index']
  #allocation1 [shape = 'u32[144,128]{1,0:T(1,128)}', space=vmem, size = 0x12000, scoped, tag = 'internal scratch']
  #allocation2 [shape = 'f32[4,256]{1,0:T(4,128)}', space=vmem, size = 0x1000, scoped, tag = 'scratch operand']
  #allocation3 [shape = 'bf16[4,256]{1,0:T(4,128)(2,1)}', space=vmem, size = 0x800, scoped, tag = 'scratch operand']
  %s0 = inlined_call_operand.hbm [shape: f32[2,4,256], index: 0, kind: input, shape index: {}]
  %s1 = inlined_call_operand.hbm [shape: f32[4,4], index: 1, kind: input, shape index: {}]
  %s2 = inlined_call_operand.vmem [shape: f32[4,4], index: 2, kind: input, shape index: {}]
  %s3 = inlined_call_operand.vmem [shape: f32[4,4], index: 3, kind: input, shape index: {}]
  %s4 = inlined_call_operand.hbm [shape: f32[2,4,256], index: 4, kind: output, shape index: {}]
  %s5 = sld [smem:[#allocation0]]
  $region61: #{tpu_custom_call.1} parent=0
    _
  %s7 = ssub.s32 1, %s5
  %s8 = scalar_select 0, %s7, %s5
  $region1: #{tpu_custom_call.1} parent=0
    #allocation4 [shape = 'u8[8192]{0}', space=vmem, size = 0x2000, scoped, tag = 'input window, operand 0']
    #allocation5 [shape = 's32[2]{0}', space=sflag, size = 0x8, scoped, tag = 'scoped memory for tpu_custom_call.1']
    #allocation6 [shape = 's32[2]{0}', space=sflag, size = 0x8, scoped, tag = 'scoped memory for tpu_custom_call.1']
    #allocation7 [shape = 'u8[2048]{0}', space=vmem, size = 0x800, scoped, tag = 'input window, operand 1, single buffered']
    #allocation8 [shape = 's32[1]{0}', space=sflag, size = 0x4, scoped, tag = 'scoped memory for tpu_custom_call.1']
    #allocation9 [shape = 'u8[8192]{0}', space=vmem, size = 0x2000, scoped, tag = 'output window, operand 0']
    %9 = vsyncpa [#allocation5], 0
    %s10 = scalar_lea.sflag [#allocation5], 1
    %11 = vsyncpa %s10, 0
    %12 = vsyncpa [#allocation8], 0
    %13 = vsyncpa [#allocation6], 0
    %s14 = scalar_lea.sflag [#allocation6], 1
    %15 = vsyncpa %s14, 0
    loop: start=0, step=1, limit=4
    $region2: #{tpu_custom_call.1} parent=1 // loop_pre_header
      _
    $region3: #{tpu_custom_call.1} parent=1 // loop_header
      %s17 = sphi 0, %s21
      %p18 = scmp.ge.s32.totalorder %s17, 4
      %s24 = sphi 0, %s36
      %s25 = sphi 0, %s32
      %s26 = sphi 0, %s24
      %s27 = sphi 0, %s25
      %s28 = sphi 0, %s26
      %s29 = sphi 0, %s27
      %s39 = sphi 0, %s41
      %s42 = sphi 0, %s39
      %s43 = sphi 0, %s42
      %s59 = sphi 0, %s43
      %s63 = sphi 0, %s63
      %s65 = sphi 0, %s63
      %s66 = sphi 0, %s65
      %s80 = sphi 0, %s66
      %s84 = sphi 0, %s84
      %s86 = sphi 0, %s84
      %s87 = sphi 0, %s86
      %s101 = sphi 0, %s87
      %s105 = sphi 0, %s105
      %s107 = sphi 0, %s105
      %s108 = sphi 0, %s107
      %s122 = sphi 0, %s108
      %s130 = sphi 0, %s132
      %s133 = sphi 0, %s130
      %s134 = sphi 0, %s133
      %s150 = sphi 0, %s134
    $region4: #{tpu_custom_call.1} parent=1 // loop_header_branch
      %20 = sbr.rel (%p18) target = $region8
    $region5: #{tpu_custom_call.1} parent=1 // loop_body
      %s22 = ssub.s32 %s17, 1
      %s23 = ssub.s32 %s17, 2
      %s30 = sadd.s32 1, %s25
      %p31 = scmp.ge.s32.totalorder %s30, 1
      %s32 = scalar_select %p31, 0, %s30
      %s33 = sadd.s32 1, %s24
      %s34 = scalar_select %p31, %s33, %s24
      %p35 = scmp.ge.s32.totalorder %s34, 2
      %s36 = scalar_select %p35, 0, %s34
      %s37 = ssub.s32 %s24, %s36
      %p38 = scmp.eq.s32.totalorder %s37, 0
      %s40 = sadd.s32 %s39, 1
      %s41 = scalar_select %p38, %s39, %s40
      %p44 = pneg %p38
      %p45 = scmp.eq.s32.totalorder %s17, 1
      %p46 = por %p44, %p45
      %p47 = scmp.ne.s32.totalorder %s39, %s42
      %p48 = scmp.eq.s32.totalorder %s17, 0
      %p49 = por %p47, %p48
      %p50 = scmp.ne.s32.totalorder %s39, %s42
      %p51 = scmp.eq.s32.totalorder %s22, 1
      %p52 = por %p50, %p51
      %p53 = scmp.ne.s32.totalorder %s42, %s43
      %p54 = scmp.eq.s32.totalorder %s22, 0
      %p55 = por %p53, %p54
      %p56 = scmp.ne.s32.totalorder %s42, %s43
      %p57 = scmp.eq.s32.totalorder %s23, 1
      %p58 = por %p56, %p57
      %p60 = scmp.ne.s32.totalorder %s43, %s59
      %p61 = scmp.eq.s32.totalorder %s23, 0
      %p62 = por %p60, %p61
      %s64 = sadd.s32 %s63, 1
      %p67 = scmp.eq.s32.totalorder %s17, 1
      %p68 = scmp.ne.s32.totalorder %s63, %s65
      %p69 = scmp.eq.s32.totalorder %s17, 0
      %p70 = por %p68, %p69
      %p71 = scmp.ne.s32.totalorder %s63, %s65
      %p72 = scmp.eq.s32.totalorder %s22, 1
      %p73 = por %p71, %p72
      %p74 = scmp.ne.s32.totalorder %s65, %s66
      %p75 = scmp.eq.s32.totalorder %s22, 0
      %p76 = por %p74, %p75
      %p77 = scmp.ne.s32.totalorder %s65, %s66
      %p78 = scmp.eq.s32.totalorder %s23, 1
      %p79 = por %p77, %p78
      %p81 = scmp.ne.s32.totalorder %s66, %s80
      %p82 = scmp.eq.s32.totalorder %s23, 0
      %p83 = por %p81, %p82
      %s85 = sadd.s32 %s84, 1
      %p88 = scmp.eq.s32.totalorder %s17, 1
      %p89 = scmp.ne.s32.totalorder %s84, %s86
      %p90 = scmp.eq.s32.totalorder %s17, 0
      %p91 = por %p89, %p90
      %p92 = scmp.ne.s32.totalorder %s84, %s86
      %p93 = scmp.eq.s32.totalorder %s22, 1
      %p94 = por %p92, %p93
      %p95 = scmp.ne.s32.totalorder %s86, %s87
      %p96 = scmp.eq.s32.totalorder %s22, 0
      %p97 = por %p95, %p96
      %p98 = scmp.ne.s32.totalorder %s86, %s87
      %p99 = scmp.eq.s32.totalorder %s23, 1
      %p100 = por %p98, %p99
      %p102 = scmp.ne.s32.totalorder %s87, %s101
      %p103 = scmp.eq.s32.totalorder %s23, 0
      %p104 = por %p102, %p103
      %s106 = sadd.s32 %s105, 1
      %p109 = scmp.eq.s32.totalorder %s17, 1
      %p110 = scmp.ne.s32.totalorder %s105, %s107
      %p111 = scmp.eq.s32.totalorder %s17, 0
      %p112 = por %p110, %p111
      %p113 = scmp.ne.s32.totalorder %s105, %s107
      %p114 = scmp.eq.s32.totalorder %s22, 1
      %p115 = por %p113, %p114
      %p116 = scmp.ne.s32.totalorder %s107, %s108
      %p117 = scmp.eq.s32.totalorder %s22, 0
      %p118 = por %p116, %p117
      %p119 = scmp.ne.s32.totalorder %s107, %s108
      %p120 = scmp.eq.s32.totalorder %s23, 1
      %p121 = por %p119, %p120
      %p123 = scmp.ne.s32.totalorder %s108, %s122
      %p124 = scmp.eq.s32.totalorder %s23, 0
      %p125 = por %p123, %p124
      %s126 = ssub.s32 %s24, %s36
      %s127 = ssub.s32 %s25, %s32
      %s128 = sor.u32 %s126, %s127
      %p129 = scmp.eq.s32.totalorder %s128, 0
      %s131 = sadd.s32 %s130, 1
      %s132 = scalar_select %p129, %s130, %s131
      %p135 = pneg %p129
      %p136 = scmp.eq.s32.totalorder %s17, 1
      %p137 = por %p135, %p136
      %p138 = scmp.ne.s32.totalorder %s130, %s133
      %p139 = scmp.eq.s32.totalorder %s17, 0
      %p140 = por %p138, %p139
      %p141 = scmp.ne.s32.totalorder %s130, %s133
      %p142 = scmp.eq.s32.totalorder %s22, 1
      %p143 = por %p141, %p142
      %p144 = scmp.ne.s32.totalorder %s133, %s134
      %p145 = scmp.eq.s32.totalorder %s22, 0
      %p146 = por %p144, %p145
      %p147 = scmp.ne.s32.totalorder %s133, %s134
      %p148 = scmp.eq.s32.totalorder %s23, 1
      %p149 = por %p147, %p148
      %p151 = scmp.ne.s32.totalorder %s134, %s150
      %p152 = scmp.eq.s32.totalorder %s23, 0
      %p153 = por %p151, %p152
      %p154 = scmp.le.s32.totalorder 1, %s17
      %p155 = scmp.lt.s32.totalorder %s17, 3
      %p156 = pnand %p154, %p155
      %p157 = pneg %p156
      // Predicated region
      $region9: #{tpu_custom_call.1} parent=5 // pred_check
        _
      $region10: #{tpu_custom_call.1} parent=5 // pred_check_branch
        %159 = sbr.rel (%p156) target = $region12
      $region11: #{tpu_custom_call.1} parent=5 // pred_region
        %s160 = ssub.s32 %s17, 1
        // Predicated region
        $region13: #{tpu_custom_call.1} parent=11 // pred_check
          %p161 = pneg %p76
        $region14: #{tpu_custom_call.1} parent=11 // pred_check_branch
          %163 = sbr.rel (%p161) target = $region16
        $region15: #{tpu_custom_call.1} parent=11 // pred_region
          %s165 = ssub.s32 64, 64
          %166 = vsyncadd [#allocation8], %s165
          %s168 = sshll.u32 [#allocation7], 4
          %s169 = int_to_ptr.vmem [resolvable:$true] %s168
          %171 = dma.hbm_to_vmem [thread:$0]  %s1, 64, %s169, [#allocation8]
        $region16: #{tpu_custom_call.1} parent=11 // pred_fallthru
          _
        // Predicated region
        $region17: #{tpu_custom_call.1} parent=11 // pred_check
          %p172 = pneg %p97
        $region18: #{tpu_custom_call.1} parent=11 // pred_check_branch
          %174 = sbr.rel (%p172) target = $region20
        $region19: #{tpu_custom_call.1} parent=11 // pred_region
          _
        $region20: #{tpu_custom_call.1} parent=11 // pred_fallthru
          _
        // Predicated region
        $region21: #{tpu_custom_call.1} parent=11 // pred_check
          %p175 = pneg %p118
        $region22: #{tpu_custom_call.1} parent=11 // pred_check_branch
          %177 = sbr.rel (%p175) target = $region24
        $region23: #{tpu_custom_call.1} parent=11 // pred_region
          _
        $region24: #{tpu_custom_call.1} parent=11 // pred_fallthru
          _
      $region12: #{tpu_custom_call.1} parent=5 // pred_fallthru
        _
      %p178 = scmp.lt.s32.totalorder %s17, 2
      // Predicated region
      $region25: #{tpu_custom_call.1} parent=5 // pred_check
        %p179 = pneg %p178
      $region26: #{tpu_custom_call.1} parent=5 // pred_check_branch
        %181 = sbr.rel (%p179) target = $region28
      $region27: #{tpu_custom_call.1} parent=5 // pred_region
        // Predicated region
        $region29: #{tpu_custom_call.1} parent=27 // pred_check
          %p182 = pneg %p49
        $region30: #{tpu_custom_call.1} parent=27 // pred_check_branch
          %184 = sbr.rel (%p182) target = $region32
        $region31: #{tpu_custom_call.1} parent=27 // pred_region
          %s185 = sand.u32 %s39, 1
          %s186 = scalar_lea.sflag [#allocation5], %s185
          %s187 = sand.u32 %s39, 1
          %s188 = smul.addr %s187, 8
          %s189 = scalar_lea.vmem [#allocation4], %s188
          %s191 = ssub.s32 128, 128
          %192 = vsyncadd %s186, %s191
          %s193 = smul.addr %s24, 2
          %s194 = smul.addr %s193, 64
          %s195 = scalar_lea.hbm %s0, %s194
          %s197 = sshll.u32 %s189, 4
          %s198 = int_to_ptr.vmem [resolvable:$true] %s197
          %200 = dma.hbm_to_vmem [thread:$0]  %s195, 128, %s198, %s186
        $region32: #{tpu_custom_call.1} parent=27 // pred_fallthru
          _
      $region28: #{tpu_custom_call.1} parent=5 // pred_fallthru
        _
      %p201 = scmp.le.s32.totalorder 1, %s17
      %p202 = scmp.lt.s32.totalorder %s17, 3
      %p203 = pnand %p201, %p202
      %p204 = pneg %p203
      // Predicated region
      $region33: #{tpu_custom_call.1} parent=5 // pred_check
        _
      $region34: #{tpu_custom_call.1} parent=5 // pred_check_branch
        %206 = sbr.rel (%p203) target = $region36
      $region35: #{tpu_custom_call.1} parent=5 // pred_region
        %s207 = ssub.s32 %s17, 1
        %s208 = sand.u32 %s42, 1
        %s209 = scalar_lea.sflag [#allocation5], %s208
        %s210 = sand.u32 %s42, 1
        %s211 = smul.addr %s210, 8
        %s212 = scalar_lea.vmem [#allocation4], %s211
        // Predicated region
        $region37: #{tpu_custom_call.1} parent=35 // pred_check
          %p213 = pneg %p55
        $region38: #{tpu_custom_call.1} parent=35 // pred_check_branch
          %215 = sbr.rel (%p213) target = $region40
        $region39: #{tpu_custom_call.1} parent=35 // pred_region
          %216 = dma.done %s209, 128
        $region40: #{tpu_custom_call.1} parent=35 // pred_fallthru
          _
        // Predicated region
        $region41: #{tpu_custom_call.1} parent=35 // pred_check
          %p217 = pneg %p76
        $region42: #{tpu_custom_call.1} parent=35 // pred_check_branch
          %219 = sbr.rel (%p217) target = $region44
        $region43: #{tpu_custom_call.1} parent=35 // pred_region
          %220 = dma.done [#allocation8], 64
        $region44: #{tpu_custom_call.1} parent=35 // pred_fallthru
          _
        %s221 = sand.u32 %s42, 1
        %s222 = scalar_lea.sflag [#allocation5], %s221
        %s223 = sand.u32 %s42, 1
        %s224 = smul.addr %s223, 8
        %s225 = scalar_lea.vmem [#allocation4], %s224
        %p226 = pneg %p55
        %p227 = pneg %p52
        %p228 = pneg %p76
        %p229 = pneg %p73
        %p230 = pneg %p97
        %p231 = pneg %p94
        %p232 = pneg %p118
        %p233 = pneg %p115
        %p234 = pneg %p146
        %p235 = pneg %p143
        %s236 = sand.u32 %s133, 1
        %s237 = scalar_lea.sflag [#allocation6], %s236
        %s238 = sand.u32 %s133, 1
        %s239 = smul.addr %s238, 8
        %s240 = scalar_lea.vmem [#allocation9], %s239
        %s241 = smul.u32 2, %s27
        %p242 = scmp.eq.s32.totalorder %s27, 0
        // Predicated region
        $region45: #{tpu_custom_call.1} parent=35 // pred_check
          %p243 = pneg %p242
        $region46: #{tpu_custom_call.1} parent=35 // pred_check_branch
          %245 = sbr.rel (%p243) target = $region48
        $region47: #{tpu_custom_call.1} parent=35 // pred_region
          %v246 = vld [vmem:[%s212] sm:$0xff]
          %v247 = vld [vmem:[#allocation7] sm:$0xf]
          %v249 = vcombine.high %v246, %v246
          %vm250 = vcmask 31744
          %v252 = vsel %vm250, %v247, 0
          %vm254 = vcmask 1043456
          %v255 = vsel %vm254, %v246, 0
          %v257 = vsel %vm254, %v249, 0
          %259 = vmatprep.subr.mxu0 %v257
          %260 = vmatpush1.msra.mxu0 %v255
          %261 = vmatprep.subr.mxu0 0.0
          %262 = vmatpush1.msra.mxu0 0.0
          %263 = vmatprep.subr.mxu0 0.0
          %264 = vmatpush1.msra.mxu0 0.0
          %265 = vmatprep.subr.mxu0 0.0
          %266 = vmatpush1.msra.mxu0 0.0
          %267 = vmatprep.subr.mxu0 0.0
          %268 = vmatpush1.msra.mxu0 0.0
          %269 = vmatprep.subr.mxu0 0.0
          %270 = vmatpush1.msra.mxu0 0.0
          %271 = vmatprep.subr.mxu0 0.0
          %272 = vmatpush1.msra.mxu0 0.0
          %273 = vmatprep.subr.mxu0 0.0
          %274 = vmatpush1.msra.mxu0 0.0
          %275 = vmatprep.subr.mxu0 0.0
          %276 = vmatpush1.msra.mxu0 0.0
          %277 = vmatprep.subr.mxu0 0.0
          %278 = vmatpush1.msra.mxu0 0.0
          %279 = vmatprep.subr.mxu0 0.0
          %280 = vmatpush1.msra.mxu0 0.0
          %281 = vmatprep.subr.mxu0 0.0
          %282 = vmatpush1.msra.mxu0 0.0
          %283 = vmatprep.subr.mxu0 0.0
          %284 = vmatpush1.msra.mxu0 0.0
          %285 = vmatprep.subr.mxu0 0.0
          %286 = vmatpush1.msra.mxu0 0.0
          %287 = vmatprep.subr.mxu0 0.0
          %288 = vmatpush1.msra.mxu0 0.0
          %289 = vmatprep.subr.mxu0 0.0
          %290 = vmatpush1.msra.mxu0 0.0
          %291 = vmatprep.subr.mxu0 0.0
          %292 = vmatpush1.msra.mxu0 0.0
          %293 = vmatprep.subr.mxu0 0.0
          %294 = vmatpush1.msra.mxu0 0.0
          %295 = vmatprep.subr.mxu0 0.0
          %296 = vmatpush1.msra.mxu0 0.0
          %297 = vmatprep.subr.mxu0 0.0
          %298 = vmatpush1.msra.mxu0 0.0
          %299 = vmatprep.subr.mxu0 0.0
          %300 = vmatpush1.msra.mxu0 0.0
          %301 = vmatprep.subr.mxu0 0.0
          %302 = vmatpush1.msra.mxu0 0.0
          %303 = vmatprep.subr.mxu0 0.0
          %304 = vmatpush1.msra.mxu0 0.0
          %305 = vmatprep.subr.mxu0 0.0
          %306 = vmatpush1.msra.mxu0 0.0
          %307 = vmatprep.subr.mxu0 0.0
          %308 = vmatpush1.msra.mxu0 0.0
          %309 = vmatprep.subr.mxu0 0.0
          %310 = vmatpush1.msra.mxu0 0.0
          %311 = vmatprep.subr.mxu0 0.0
          %312 = vmatpush1.msra.mxu0 0.0
          %313 = vmatprep.subr.mxu0 0.0
          %314 = vmatpush1.msra.mxu0 0.0
          %315 = vmatprep.subr.mxu0 0.0
          %316 = vmatpush1.msra.mxu0 0.0
          %317 = vmatprep.subr.mxu0 0.0
          %318 = vmatpush1.msra.mxu0 0.0
          %319 = vmatprep.subr.mxu0 0.0
          %320 = vmatpush1.msra.mxu0 0.0
          %321 = vmatprep.subr.mxu0 0.0
          %322 = vmatpush1.msra.mxu0 0.0
          %323 = vmatprep.mubr.f32.mxu0 0.0
          %324 = vmatmul.mubr.f32.gmra.mrb[0].mxu0 %v252
          %v325 = vpop.f32.mrb[0].mxu0
          %v326 = vadd.f32 0.0, %v325
          %v327 = vpop.f32.mrb[0].mxu0
          %v328 = vadd.f32 0.0, %v327
          %329 = vdwg.mxu0
          %v332 = vcombine.low %v326, %v328
          %334 = vst [vmem:[#allocation2] sm:$0xff] %v332
          %v335 = vld [vmem:[%s3] sm:$0xf]
          %v337 = vsel %vm250, %v335, 0
          %339 = vmatprep.subr.mxu0 %v257
          %340 = vmatpush1.msra.mxu0 %v255
          %341 = vmatprep.subr.mxu0 0.0
          %342 = vmatpush1.msra.mxu0 0.0
          %343 = vmatprep.subr.mxu0 0.0
          %344 = vmatpush1.msra.mxu0 0.0
          %345 = vmatprep.subr.mxu0 0.0
          %346 = vmatpush1.msra.mxu0 0.0
          %347 = vmatprep.subr.mxu0 0.0
          %348 = vmatpush1.msra.mxu0 0.0
          %349 = vmatprep.subr.mxu0 0.0
          %350 = vmatpush1.msra.mxu0 0.0
          %351 = vmatprep.subr.mxu0 0.0
          %352 = vmatpush1.msra.mxu0 0.0
          %353 = vmatprep.subr.mxu0 0.0
          %354 = vmatpush1.msra.mxu0 0.0
          %355 = vmatprep.subr.mxu0 0.0
          %356 = vmatpush1.msra.mxu0 0.0
          %357 = vmatprep.subr.mxu0 0.0
          %358 = vmatpush1.msra.mxu0 0.0
          %359 = vmatprep.subr.mxu0 0.0
          %360 = vmatpush1.msra.mxu0 0.0
          %361 = vmatprep.subr.mxu0 0.0
          %362 = vmatpush1.msra.mxu0 0.0
          %363 = vmatprep.subr.mxu0 0.0
          %364 = vmatpush1.msra.mxu0 0.0
          %365 = vmatprep.subr.mxu0 0.0
          %366 = vmatpush1.msra.mxu0 0.0
          %367 = vmatprep.subr.mxu0 0.0
          %368 = vmatpush1.msra.mxu0 0.0
          %369 = vmatprep.subr.mxu0 0.0
          %370 = vmatpush1.msra.mxu0 0.0
          %371 = vmatprep.subr.mxu0 0.0
          %372 = vmatpush1.msra.mxu0 0.0
          %373 = vmatprep.subr.mxu0 0.0
          %374 = vmatpush1.msra.mxu0 0.0
          %375 = vmatprep.subr.mxu0 0.0
          %376 = vmatpush1.msra.mxu0 0.0
          %377 = vmatprep.subr.mxu0 0.0
          %378 = vmatpush1.msra.mxu0 0.0
          %379 = vmatprep.subr.mxu0 0.0
          %380 = vmatpush1.msra.mxu0 0.0
          %381 = vmatprep.subr.mxu0 0.0
          %382 = vmatpush1.msra.mxu0 0.0
          %383 = vmatprep.subr.mxu0 0.0
          %384 = vmatpush1.msra.mxu0 0.0
          %385 = vmatprep.subr.mxu0 0.0
          %386 = vmatpush1.msra.mxu0 0.0
          %387 = vmatprep.subr.mxu0 0.0
          %388 = vmatpush1.msra.mxu0 0.0
          %389 = vmatprep.subr.mxu0 0.0
          %390 = vmatpush1.msra.mxu0 0.0
          %391 = vmatprep.subr.mxu0 0.0
          %392 = vmatpush1.msra.mxu0 0.0
          %393 = vmatprep.subr.mxu0 0.0
          %394 = vmatpush1.msra.mxu0 0.0
          %395 = vmatprep.subr.mxu0 0.0
          %396 = vmatpush1.msra.mxu0 0.0
          %397 = vmatprep.subr.mxu0 0.0
          %398 = vmatpush1.msra.mxu0 0.0
          %399 = vmatprep.subr.mxu0 0.0
          %400 = vmatpush1.msra.mxu0 0.0
          %401 = vmatprep.subr.mxu0 0.0
          %402 = vmatpush1.msra.mxu0 0.0
          %403 = vmatprep.mubr.f32.mxu0 0.0
          %404 = vmatmul.mubr.f32.gmra.mrb[0].mxu0 %v337
          %v405 = vpop.f32.mrb[0].mxu0
          %v406 = vadd.f32 0.0, %v405
          %v407 = vpop.f32.mrb[0].mxu0
          %v408 = vadd.f32 0.0, %v407
          %409 = vdwg.mxu0
          %v410 = vpack.c.bf16 %v406, %v406
          %v411 = vpack.c.bf16 %v408, %v408
          %v414 = vcombine.low %v410, %v411
          %v416 = vunpack.c.l.s4 1983009808
          %v417 = vunpack.c.0.s8 %v416
          %v418 = vlaneseq
          %v419 = vshrl.u32 %v418, 7
          %v420 = vsub.s32 %v417, %v419
          %v421 = vrot.slane %v414, %v420
          %423 = vst [vmem:[#allocation3] sm:$0xf] %v421
        $region48: #{tpu_custom_call.1} parent=35 // pred_fallthru
          _
        %s424 = smul.u32 %s27, 256
        %s425 = sshra.s32 %s424, 7
        %s426 = sand.u32 %s424, 127
        %s427 = smul.addr %s425, 4
        %s428 = scalar_lea.vmem %s212, %s427 [#allocation4]
        %v429 = vld [vmem:[%s428] sm:$0xff]
        %v430 = vld [vmem:[%s2] sm:$0xf]
        %v432 = vcombine.high %v429, %v429
        %vm433 = vcmask 31744
        %v435 = vsel %vm433, %v430, 0
        %vm437 = vcmask 1043456
        %v438 = vsel %vm437, %v429, 0
        %v440 = vsel %vm437, %v432, 0
        %442 = vmatprep.subr.mxu0 %v440
        %443 = vmatpush1.msra.mxu0 %v438
        %444 = vmatprep.subr.mxu0 0.0
        %445 = vmatpush1.msra.mxu0 0.0
        %446 = vmatprep.subr.mxu0 0.0
        %447 = vmatpush1.msra.mxu0 0.0
        %448 = vmatprep.subr.mxu0 0.0
        %449 = vmatpush1.msra.mxu0 0.0
        %450 = vmatprep.subr.mxu0 0.0
        %451 = vmatpush1.msra.mxu0 0.0
        %452 = vmatprep.subr.mxu0 0.0
        %453 = vmatpush1.msra.mxu0 0.0
        %454 = vmatprep.subr.mxu0 0.0
        %455 = vmatpush1.msra.mxu0 0.0
        %456 = vmatprep.subr.mxu0 0.0
        %457 = vmatpush1.msra.mxu0 0.0
        %458 = vmatprep.subr.mxu0 0.0
        %459 = vmatpush1.msra.mxu0 0.0
        %460 = vmatprep.subr.mxu0 0.0
        %461 = vmatpush1.msra.mxu0 0.0
        %462 = vmatprep.subr.mxu0 0.0
        %463 = vmatpush1.msra.mxu0 0.0
        %464 = vmatprep.subr.mxu0 0.0
        %465 = vmatpush1.msra.mxu0 0.0
        %466 = vmatprep.subr.mxu0 0.0
        %467 = vmatpush1.msra.mxu0 0.0
        %468 = vmatprep.subr.mxu0 0.0
        %469 = vmatpush1.msra.mxu0 0.0
        %470 = vmatprep.subr.mxu0 0.0
        %471 = vmatpush1.msra.mxu0 0.0
        %472 = vmatprep.subr.mxu0 0.0
        %473 = vmatpush1.msra.mxu0 0.0
        %474 = vmatprep.subr.mxu0 0.0
        %475 = vmatpush1.msra.mxu0 0.0
        %476 = vmatprep.subr.mxu0 0.0
        %477 = vmatpush1.msra.mxu0 0.0
        %478 = vmatprep.subr.mxu0 0.0
        %479 = vmatpush1.msra.mxu0 0.0
        %480 = vmatprep.subr.mxu0 0.0
        %481 = vmatpush1.msra.mxu0 0.0
        %482 = vmatprep.subr.mxu0 0.0
        %483 = vmatpush1.msra.mxu0 0.0
        %484 = vmatprep.subr.mxu0 0.0
        %485 = vmatpush1.msra.mxu0 0.0
        %486 = vmatprep.subr.mxu0 0.0
        %487 = vmatpush1.msra.mxu0 0.0
        %488 = vmatprep.subr.mxu0 0.0
        %489 = vmatpush1.msra.mxu0 0.0
        %490 = vmatprep.subr.mxu0 0.0
        %491 = vmatpush1.msra.mxu0 0.0
        %492 = vmatprep.subr.mxu0 0.0
        %493 = vmatpush1.msra.mxu0 0.0
        %494 = vmatprep.subr.mxu0 0.0
        %495 = vmatpush1.msra.mxu0 0.0
        %496 = vmatprep.subr.mxu0 0.0
        %497 = vmatpush1.msra.mxu0 0.0
        %498 = vmatprep.subr.mxu0 0.0
        %499 = vmatpush1.msra.mxu0 0.0
        %500 = vmatprep.subr.mxu0 0.0
        %501 = vmatpush1.msra.mxu0 0.0
        %502 = vmatprep.subr.mxu0 0.0
        %503 = vmatpush1.msra.mxu0 0.0
        %504 = vmatprep.subr.mxu0 0.0
        %505 = vmatpush1.msra.mxu0 0.0
        %506 = vmatprep.mubr.f32.mxu0 0.0
        %507 = vmatmul.mubr.f32.gmra.mrb[0].mxu0 %v435
        %v508 = vpop.f32.mrb[0].mxu0
        %v509 = vadd.f32 0.0, %v508
        %v510 = vpop.f32.mrb[0].mxu0
        %v511 = vadd.f32 0.0, %v510
        %512 = vdwg.mxu0
        %v513 = vld [vmem:[#allocation2] sm:$0xff]
        %v515 = vcombine.high %v513, %v513
        %517 = vxpose.xlu0.b32.start [1/16] %v513, 128
        %518 = vxpose.xlu0.b32.cont [2/16] 0.0, 128
        %519 = vxpose.xlu0.b32.cont [3/16] 0.0, 128
        %520 = vxpose.xlu0.b32.cont [4/16] 0.0, 128
        %521 = vxpose.xlu0.b32.cont [5/16] 0.0, 128
        %522 = vxpose.xlu0.b32.cont [6/16] 0.0, 128
        %523 = vxpose.xlu0.b32.cont [7/16] 0.0, 128
        %524 = vxpose.xlu0.b32.cont [8/16] 0.0, 128
        %525 = vxpose.xlu0.b32.cont [9/16] 0.0, 128
        %526 = vxpose.xlu0.b32.cont [10/16] 0.0, 128
        %527 = vxpose.xlu0.b32.cont [11/16] 0.0, 128
        %528 = vxpose.xlu0.b32.cont [12/16] 0.0, 128
        %529 = vxpose.xlu0.b32.cont [13/16] 0.0, 128
        %530 = vxpose.xlu0.b32.cont [14/16] 0.0, 128
        %531 = vxpose.xlu0.b32.cont [15/16] 0.0, 128
        %532 = vxpose.xlu0.b32.end [16/16] 0.0, 128
        %v533 = vpop.trf.xlu0
        %v534 = vpop.trf.xlu0
        %v535 = vpop.trf.xlu0
        %v536 = vpop.trf.xlu0
        %v537 = vpop.trf.xlu0
        %v538 = vpop.trf.xlu0
        %v539 = vpop.trf.xlu0
        %v540 = vpop.trf.xlu0
        %v541 = vpop.trf.xlu0
        %v542 = vpop.trf.xlu0
        %v543 = vpop.trf.xlu0
        %v544 = vpop.trf.xlu0
        %v545 = vpop.trf.xlu0
        %v546 = vpop.trf.xlu0
        %v547 = vpop.trf.xlu0
        %v548 = vpop.trf.xlu0
        %549 = vxpose.xlu0.b32.start [1/16] %v515, 128
        %550 = vxpose.xlu0.b32.cont [2/16] 0.0, 128
        %551 = vxpose.xlu0.b32.cont [3/16] 0.0, 128
        %552 = vxpose.xlu0.b32.cont [4/16] 0.0, 128
        %553 = vxpose.xlu0.b32.cont [5/16] 0.0, 128
        %554 = vxpose.xlu0.b32.cont [6/16] 0.0, 128
        %555 = vxpose.xlu0.b32.cont [7/16] 0.0, 128
        %556 = vxpose.xlu0.b32.cont [8/16] 0.0, 128
        %557 = vxpose.xlu0.b32.cont [9/16] 0.0, 128
        %558 = vxpose.xlu0.b32.cont [10/16] 0.0, 128
        %559 = vxpose.xlu0.b32.cont [11/16] 0.0, 128
        %560 = vxpose.xlu0.b32.cont [12/16] 0.0, 128
        %561 = vxpose.xlu0.b32.cont [13/16] 0.0, 128
        %562 = vxpose.xlu0.b32.cont [14/16] 0.0, 128
        %563 = vxpose.xlu0.b32.cont [15/16] 0.0, 128
        %564 = vxpose.xlu0.b32.end [16/16] 0.0, 128
        %v565 = vpop.trf.xlu0
        %v566 = vpop.trf.xlu0
        %v567 = vpop.trf.xlu0
        %v568 = vpop.trf.xlu0
        %v569 = vpop.trf.xlu0
        %v570 = vpop.trf.xlu0
        %v571 = vpop.trf.xlu0
        %v572 = vpop.trf.xlu0
        %v573 = vpop.trf.xlu0
        %v574 = vpop.trf.xlu0
        %v575 = vpop.trf.xlu0
        %v576 = vpop.trf.xlu0
        %v577 = vpop.trf.xlu0
        %v578 = vpop.trf.xlu0
        %v579 = vpop.trf.xlu0
        %v580 = vpop.trf.xlu0
        %v582 = vsel %vm433, %v533, 0
        %v585 = vsel %vm433, %v534, 0
        %v588 = vsel %vm433, %v535, 0
        %v591 = vsel %vm433, %v536, 0
        %v594 = vsel %vm433, %v537, 0
        %v597 = vsel %vm433, %v538, 0
        %v600 = vsel %vm433, %v539, 0
        %v603 = vsel %vm433, %v540, 0
        %v606 = vsel %vm433, %v541, 0
        %v609 = vsel %vm433, %v542, 0
        %v612 = vsel %vm433, %v543, 0
        %v615 = vsel %vm433, %v544, 0
        %v618 = vsel %vm433, %v545, 0
        %v621 = vsel %vm433, %v546, 0
        %v624 = vsel %vm433, %v547, 0
        %v627 = vsel %vm433, %v548, 0
        %v630 = vsel %vm433, %v565, 0
        %v633 = vsel %vm433, %v566, 0
        %v636 = vsel %vm433, %v567, 0
        %v639 = vsel %vm433, %v568, 0
        %v642 = vsel %vm433, %v569, 0
        %v645 = vsel %vm433, %v570, 0
        %v648 = vsel %vm433, %v571, 0
        %v651 = vsel %vm433, %v572, 0
        %v654 = vsel %vm433, %v573, 0
        %v657 = vsel %vm433, %v574, 0
        %v660 = vsel %vm433, %v575, 0
        %v663 = vsel %vm433, %v576, 0
        %v666 = vsel %vm433, %v577, 0
        %v669 = vsel %vm433, %v578, 0
        %v672 = vsel %vm433, %v579, 0
        %v675 = vsel %vm433, %v580, 0
        %v678 = vsel %vm437, %v509, 0
        %v681 = vsel %vm437, %v511, 0
        %683 = vmatprep.subr.mxu0 %v681
        %684 = vmatpush1.msra.mxu0 %v678
        %685 = vmatprep.subr.mxu0 0.0
        %686 = vmatpush1.msra.mxu0 0.0
        %687 = vmatprep.subr.mxu0 0.0
        %688 = vmatpush1.msra.mxu0 0.0
        %689 = vmatprep.subr.mxu0 0.0
        %690 = vmatpush1.msra.mxu0 0.0
        %691 = vmatprep.subr.mxu0 0.0
        %692 = vmatpush1.msra.mxu0 0.0
        %693 = vmatprep.subr.mxu0 0.0
        %694 = vmatpush1.msra.mxu0 0.0
        %695 = vmatprep.subr.mxu0 0.0
        %696 = vmatpush1.msra.mxu0 0.0
        %697 = vmatprep.subr.mxu0 0.0
        %698 = vmatpush1.msra.mxu0 0.0
        %699 = vmatprep.subr.mxu0 0.0
        %700 = vmatpush1.msra.mxu0 0.0
        %701 = vmatprep.subr.mxu0 0.0
        %702 = vmatpush1.msra.mxu0 0.0
        %703 = vmatprep.subr.mxu0 0.0
        %704 = vmatpush1.msra.mxu0 0.0
        %705 = vmatprep.subr.mxu0 0.0
        %706 = vmatpush1.msra.mxu0 0.0
        %707 = vmatprep.subr.mxu0 0.0
        %708 = vmatpush1.msra.mxu0 0.0
        %709 = vmatprep.subr.mxu0 0.0
        %710 = vmatpush1.msra.mxu0 0.0
        %711 = vmatprep.subr.mxu0 0.0
        %712 = vmatpush1.msra.mxu0 0.0
        %713 = vmatprep.subr.mxu0 0.0
        %714 = vmatpush1.msra.mxu0 0.0
        %715 = vmatprep.subr.mxu0 0.0
        %716 = vmatpush1.msra.mxu0 0.0
        %717 = vmatprep.subr.mxu0 0.0
        %718 = vmatpush1.msra.mxu0 0.0
        %719 = vmatprep.subr.mxu0 0.0
        %720 = vmatpush1.msra.mxu0 0.0
        %721 = vmatprep.subr.mxu0 0.0
        %722 = vmatpush1.msra.mxu0 0.0
        %723 = vmatprep.subr.mxu0 0.0
        %724 = vmatpush1.msra.mxu0 0.0
        %725 = vmatprep.subr.mxu0 0.0
        %726 = vmatpush1.msra.mxu0 0.0
        %727 = vmatprep.subr.mxu0 0.0
        %728 = vmatpush1.msra.mxu0 0.0
        %729 = vmatprep.subr.mxu0 0.0
        %730 = vmatpush1.msra.mxu0 0.0
        %731 = vmatprep.subr.mxu0 0.0
        %732 = vmatpush1.msra.mxu0 0.0
        %733 = vmatprep.subr.mxu0 0.0
        %734 = vmatpush1.msra.mxu0 0.0
        %735 = vmatprep.subr.mxu0 0.0
        %736 = vmatpush1.msra.mxu0 0.0
        %737 = vmatprep.subr.mxu0 0.0
        %738 = vmatpush1.msra.mxu0 0.0
        %739 = vmatprep.subr.mxu0 0.0
        %740 = vmatpush1.msra.mxu0 0.0
        %741 = vmatprep.subr.mxu0 0.0
        %742 = vmatpush1.msra.mxu0 0.0
        %743 = vmatprep.subr.mxu0 0.0
        %744 = vmatpush1.msra.mxu0 0.0
        %745 = vmatprep.subr.mxu0 0.0
        %746 = vmatpush1.msra.mxu0 0.0
        %747 = vmatprep.mubr.f32.mxu0 0.0
        %748 = vmatmul.mubr.f32.gmra.mrb[0].mxu0 %v582
        %v749 = vpop.f32.mrb[0].mxu0
        %v750 = vadd.f32 0.0, %v749
        %v751 = vpop.f32.mrb[0].mxu0
        %v752 = vadd.f32 0.0, %v751
        %753 = vmatprep.mubr.f32.mxu0 0.0
        %754 = vmatmul.mubr.f32.gmra.mrb[0].mxu0 %v585
        %v755 = vpop.f32.mrb[0].mxu0
        %v756 = vadd.f32 0.0, %v755
        %v757 = vpop.f32.mrb[0].mxu0
        %v758 = vadd.f32 0.0, %v757
        %759 = vmatprep.mubr.f32.mxu0 0.0
        %760 = vmatmul.mubr.f32.gmra.mrb[0].mxu0 %v588
        %v761 = vpop.f32.mrb[0].mxu0
        %v762 = vadd.f32 0.0, %v761
        %v763 = vpop.f32.mrb[0].mxu0
        %v764 = vadd.f32 0.0, %v763
        %765 = vmatprep.mubr.f32.mxu0 0.0
        %766 = vmatmul.mubr.f32.gmra.mrb[0].mxu0 %v591
        %v767 = vpop.f32.mrb[0].mxu0
        %v768 = vadd.f32 0.0, %v767
        %v769 = vpop.f32.mrb[0].mxu0
        %v770 = vadd.f32 0.0, %v769
        %771 = vmatprep.mubr.f32.mxu0 0.0
        %772 = vmatmul.mubr.f32.gmra.mrb[0].mxu0 %v594
        %v773 = vpop.f32.mrb[0].mxu0
        %v774 = vadd.f32 0.0, %v773
        %v775 = vpop.f32.mrb[0].mxu0
        %v776 = vadd.f32 0.0, %v775
        %777 = vmatprep.mubr.f32.mxu0 0.0
        %778 = vmatmul.mubr.f32.gmra.mrb[0].mxu0 %v597
        %v779 = vpop.f32.mrb[0].mxu0
        %v780 = vadd.f32 0.0, %v779
        %v781 = vpop.f32.mrb[0].mxu0
        %v782 = vadd.f32 0.0, %v781
        %783 = vmatprep.mubr.f32.mxu0 0.0
        %784 = vmatmul.mubr.f32.gmra.mrb[0].mxu0 %v600
        %v785 = vpop.f32.mrb[0].mxu0
        %v786 = vadd.f32 0.0, %v785
        %v787 = vpop.f32.mrb[0].mxu0
        %v788 = vadd.f32 0.0, %v787
        %789 = vmatprep.mubr.f32.mxu0 0.0
        %790 = vmatmul.mubr.f32.gmra.mrb[0].mxu0 %v603
        %v791 = vpop.f32.mrb[0].mxu0
        %v792 = vadd.f32 0.0, %v791
        %v793 = vpop.f32.mrb[0].mxu0
        %v794 = vadd.f32 0.0, %v793
        %795 = vmatprep.mubr.f32.mxu0 0.0
        %796 = vmatmul.mubr.f32.gmra.mrb[0].mxu0 %v606
        %v797 = vpop.f32.mrb[0].mxu0
        %v798 = vadd.f32 0.0, %v797
        %v799 = vpop.f32.mrb[0].mxu0
        %v800 = vadd.f32 0.0, %v799
        %801 = vmatprep.mubr.f32.mxu0 0.0
        %802 = vmatmul.mubr.f32.gmra.mrb[0].mxu0 %v609
        %v803 = vpop.f32.mrb[0].mxu0
        %v804 = vadd.f32 0.0, %v803
        %v805 = vpop.f32.mrb[0].mxu0
        %v806 = vadd.f32 0.0, %v805
        %807 = vmatprep.mubr.f32.mxu0 0.0
        %808 = vmatmul.mubr.f32.gmra.mrb[0].mxu0 %v612
        %v809 = vpop.f32.mrb[0].mxu0
        %v810 = vadd.f32 0.0, %v809
        %v811 = vpop.f32.mrb[0].mxu0
        %v812 = vadd.f32 0.0, %v811
        %813 = vmatprep.mubr.f32.mxu0 0.0
        %814 = vmatmul.mubr.f32.gmra.mrb[0].mxu0 %v615
        %v815 = vpop.f32.mrb[0].mxu0
        %v816 = vadd.f32 0.0, %v815
        %v817 = vpop.f32.mrb[0].mxu0
        %v818 = vadd.f32 0.0, %v817
        %819 = vmatprep.mubr.f32.mxu0 0.0
        %820 = vmatmul.mubr.f32.gmra.mrb[0].mxu0 %v618
        %v821 = vpop.f32.mrb[0].mxu0
        %v822 = vadd.f32 0.0, %v821
        %v823 = vpop.f32.mrb[0].mxu0
        %v824 = vadd.f32 0.0, %v823
        %825 = vmatprep.mubr.f32.mxu0 0.0
        %826 = vmatmul.mubr.f32.gmra.mrb[0].mxu0 %v621
        %v827 = vpop.f32.mrb[0].mxu0
        %v828 = vadd.f32 0.0, %v827
        %v829 = vpop.f32.mrb[0].mxu0
        %v830 = vadd.f32 0.0, %v829
        %831 = vmatprep.mubr.f32.mxu0 0.0
        %832 = vmatmul.mubr.f32.gmra.mrb[0].mxu0 %v624
        %v833 = vpop.f32.mrb[0].mxu0
        %v834 = vadd.f32 0.0, %v833
        %v835 = vpop.f32.mrb[0].mxu0
        %v836 = vadd.f32 0.0, %v835
        %837 = vmatprep.mubr.f32.mxu0 0.0
        %838 = vmatmul.mubr.f32.gmra.mrb[0].mxu0 %v627
        %v839 = vpop.f32.mrb[0].mxu0
        %v840 = vadd.f32 0.0, %v839
        %v841 = vpop.f32.mrb[0].mxu0
        %v842 = vadd.f32 0.0, %v841
        %843 = vmatprep.mubr.f32.mxu0 0.0
        %844 = vmatmul.mubr.f32.gmra.mrb[0].mxu0 %v630
        %v845 = vpop.f32.mrb[0].mxu0
        %v846 = vadd.f32 0.0, %v845
        %v847 = vpop.f32.mrb[0].mxu0
        %v848 = vadd.f32 0.0, %v847
        %849 = vmatprep.mubr.f32.mxu0 0.0
        %850 = vmatmul.mubr.f32.gmra.mrb[0].mxu0 %v633
        %v851 = vpop.f32.mrb[0].mxu0
        %v852 = vadd.f32 0.0, %v851
        %v853 = vpop.f32.mrb[0].mxu0
        %v854 = vadd.f32 0.0, %v853
        %855 = vmatprep.mubr.f32.mxu0 0.0
        %856 = vmatmul.mubr.f32.gmra.mrb[0].mxu0 %v636
        %v857 = vpop.f32.mrb[0].mxu0
        %v858 = vadd.f32 0.0, %v857
        %v859 = vpop.f32.mrb[0].mxu0
        %v860 = vadd.f32 0.0, %v859
        %861 = vmatprep.mubr.f32.mxu0 0.0
        %862 = vmatmul.mubr.f32.gmra.mrb[0].mxu0 %v639
        %v863 = vpop.f32.mrb[0].mxu0
        %v864 = vadd.f32 0.0, %v863
        %v865 = vpop.f32.mrb[0].mxu0
        %v866 = vadd.f32 0.0, %v865
        %867 = vmatprep.mubr.f32.mxu0 0.0
        %868 = vmatmul.mubr.f32.gmra.mrb[0].mxu0 %v642
        %v869 = vpop.f32.mrb[0].mxu0
        %v870 = vadd.f32 0.0, %v869
        %v871 = vpop.f32.mrb[0].mxu0
        %v872 = vadd.f32 0.0, %v871
        %873 = vmatprep.mubr.f32.mxu0 0.0
        %874 = vmatmul.mubr.f32.gmra.mrb[0].mxu0 %v645
        %v875 = vpop.f32.mrb[0].mxu0
        %v876 = vadd.f32 0.0, %v875
        %v877 = vpop.f32.mrb[0].mxu0
        %v878 = vadd.f32 0.0, %v877
        %879 = vmatprep.mubr.f32.mxu0 0.0
        %880 = vmatmul.mubr.f32.gmra.mrb[0].mxu0 %v648
        %v881 = vpop.f32.mrb[0].mxu0
        %v882 = vadd.f32 0.0, %v881
        %v883 = vpop.f32.mrb[0].mxu0
        %v884 = vadd.f32 0.0, %v883
        %885 = vmatprep.mubr.f32.mxu0 0.0
        %886 = vmatmul.mubr.f32.gmra.mrb[0].mxu0 %v651
        %v887 = vpop.f32.mrb[0].mxu0
        %v888 = vadd.f32 0.0, %v887
        %v889 = vpop.f32.mrb[0].mxu0
        %v890 = vadd.f32 0.0, %v889
        %891 = vmatprep.mubr.f32.mxu0 0.0
        %892 = vmatmul.mubr.f32.gmra.mrb[0].mxu0 %v654
        %v893 = vpop.f32.mrb[0].mxu0
        %v894 = vadd.f32 0.0, %v893
        %v895 = vpop.f32.mrb[0].mxu0
        %v896 = vadd.f32 0.0, %v895
        %897 = vmatprep.mubr.f32.mxu0 0.0
        %898 = vmatmul.mubr.f32.gmra.mrb[0].mxu0 %v657
        %v899 = vpop.f32.mrb[0].mxu0
        %v900 = vadd.f32 0.0, %v899
        %v901 = vpop.f32.mrb[0].mxu0
        %v902 = vadd.f32 0.0, %v901
        %903 = vmatprep.mubr.f32.mxu0 0.0
        %904 = vmatmul.mubr.f32.gmra.mrb[0].mxu0 %v660
        %v905 = vpop.f32.mrb[0].mxu0
        %v906 = vadd.f32 0.0, %v905
        %v907 = vpop.f32.mrb[0].mxu0
        %v908 = vadd.f32 0.0, %v907
        %909 = vmatprep.mubr.f32.mxu0 0.0
        %910 = vmatmul.mubr.f32.gmra.mrb[0].mxu0 %v663
        %v911 = vpop.f32.mrb[0].mxu0
        %v912 = vadd.f32 0.0, %v911
        %v913 = vpop.f32.mrb[0].mxu0
        %v914 = vadd.f32 0.0, %v913
        %915 = vmatprep.mubr.f32.mxu0 0.0
        %916 = vmatmul.mubr.f32.gmra.mrb[0].mxu0 %v666
        %v917 = vpop.f32.mrb[0].mxu0
        %v918 = vadd.f32 0.0, %v917
        %v919 = vpop.f32.mrb[0].mxu0
        %v920 = vadd.f32 0.0, %v919
        %921 = vmatprep.mubr.f32.mxu0 0.0
        %922 = vmatmul.mubr.f32.gmra.mrb[0].mxu0 %v669
        %v923 = vpop.f32.mrb[0].mxu0
        %v924 = vadd.f32 0.0, %v923
        %v925 = vpop.f32.mrb[0].mxu0
        %v926 = vadd.f32 0.0, %v925
        %927 = vmatprep.mubr.f32.mxu0 0.0
        %928 = vmatmul.mubr.f32.gmra.mrb[0].mxu0 %v672
        %v929 = vpop.f32.mrb[0].mxu0
        %v930 = vadd.f32 0.0, %v929
        %v931 = vpop.f32.mrb[0].mxu0
        %v932 = vadd.f32 0.0, %v931
        %933 = vmatprep.mubr.f32.mxu0 0.0
        %934 = vmatmul.mubr.f32.gmra.mrb[0].mxu0 %v675
        %v935 = vpop.f32.mrb[0].mxu0
        %v936 = vadd.f32 0.0, %v935
        %v937 = vpop.f32.mrb[0].mxu0
        %v938 = vadd.f32 0.0, %v937
        %939 = vdwg.mxu0
        %v940 = vmax.f32 %v750, %v762
        %v941 = vmax.f32 %v756, %v768
        %v942 = vmax.f32 %v940, %v774
        %v943 = vmax.f32 %v941, %v780
        %v944 = vmax.f32 %v942, %v786
        %v945 = vmax.f32 %v943, %v792
        %v946 = vmax.f32 %v944, %v798
        %v947 = vmax.f32 %v945, %v804
        %v948 = vmax.f32 %v946, %v810
        %v949 = vmax.f32 %v947, %v816
        %v950 = vmax.f32 %v948, %v822
        %v951 = vmax.f32 %v949, %v828
        %v952 = vmax.f32 %v950, %v834
        %v953 = vmax.f32 %v951, %v840
        %v954 = vmax.f32 %v952, %v846
        %v955 = vmax.f32 %v953, %v852
        %v956 = vmax.f32 %v954, %v858
        %v957 = vmax.f32 %v955, %v864
        %v958 = vmax.f32 %v956, %v870
        %v959 = vmax.f32 %v957, %v876
        %v960 = vmax.f32 %v958, %v882
        %v961 = vmax.f32 %v959, %v888
        %v962 = vmax.f32 %v960, %v894
        %v963 = vmax.f32 %v961, %v900
        %v964 = vmax.f32 %v962, %v906
        %v965 = vmax.f32 %v963, %v912
        %v966 = vmax.f32 %v964, %v918
        %v967 = vmax.f32 %v965, %v924
        %v968 = vmax.f32 %v966, %v930
        %v969 = vmax.f32 %v967, %v936
        %v970 = vmax.f32 %v968, %v969
        %v971 = vrot.slane %v970, 4
        %v972 = vmax.f32 %v970, %v971
        %v973 = vrot.slane %v972, 2
        %v974 = vmax.f32 %v972, %v973
        %v975 = vrot.slane %v974, 1
        %v976 = vmax.f32 %v974, %v975
        %v977 = vmax.f32 %v752, %v764
        %v978 = vmax.f32 %v758, %v770
        %v979 = vmax.f32 %v977, %v776
        %v980 = vmax.f32 %v978, %v782
        %v981 = vmax.f32 %v979, %v788
        %v982 = vmax.f32 %v980, %v794
        %v983 = vmax.f32 %v981, %v800
        %v984 = vmax.f32 %v982, %v806
        %v985 = vmax.f32 %v983, %v812
        %v986 = vmax.f32 %v984, %v818
        %v987 = vmax.f32 %v985, %v824
        %v988 = vmax.f32 %v986, %v830
        %v989 = vmax.f32 %v987, %v836
        %v990 = vmax.f32 %v988, %v842
        %v991 = vmax.f32 %v989, %v848
        %v992 = vmax.f32 %v990, %v854
        %v993 = vmax.f32 %v991, %v860
        %v994 = vmax.f32 %v992, %v866
        %v995 = vmax.f32 %v993, %v872
        %v996 = vmax.f32 %v994, %v878
        %v997 = vmax.f32 %v995, %v884
        %v998 = vmax.f32 %v996, %v890
        %v999 = vmax.f32 %v997, %v896
        %v1000 = vmax.f32 %v998, %v902
        %v1001 = vmax.f32 %v999, %v908
        %v1002 = vmax.f32 %v1000, %v914
        %v1003 = vmax.f32 %v1001, %v920
        %v1004 = vmax.f32 %v1002, %v926
        %v1005 = vmax.f32 %v1003, %v932
        %v1006 = vmax.f32 %v1004, %v938
        %v1007 = vmax.f32 %v1005, %v1006
        %v1008 = vrot.slane %v1007, 4
        %v1009 = vmax.f32 %v1007, %v1008
        %v1010 = vrot.slane %v1009, 2
        %v1011 = vmax.f32 %v1009, %v1010
        %v1012 = vrot.slane %v1011, 1
        %v1013 = vmax.f32 %v1011, %v1012
        %v1014 = vsub.f32 %v750, %v976
        %v1015 = vsub.f32 %v752, %v1013
        %v1016 = vsub.f32 %v756, %v976
        %v1017 = vsub.f32 %v758, %v1013
        %v1018 = vsub.f32 %v762, %v976
        %v1019 = vsub.f32 %v764, %v1013
        %v1020 = vsub.f32 %v768, %v976
        %v1021 = vsub.f32 %v770, %v1013
        %v1022 = vsub.f32 %v774, %v976
        %v1023 = vsub.f32 %v776, %v1013
        %v1024 = vsub.f32 %v780, %v976
        %v1025 = vsub.f32 %v782, %v1013
        %v1026 = vsub.f32 %v786, %v976
        %v1027 = vsub.f32 %v788, %v1013
        %v1028 = vsub.f32 %v792, %v976
        %v1029 = vsub.f32 %v794, %v1013
        %v1030 = vsub.f32 %v798, %v976
        %v1031 = vsub.f32 %v800, %v1013
        %v1032 = vsub.f32 %v804, %v976
        %v1033 = vsub.f32 %v806, %v1013
        %v1034 = vsub.f32 %v810, %v976
        %v1035 = vsub.f32 %v812, %v1013
        %v1036 = vsub.f32 %v816, %v976
        %v1037 = vsub.f32 %v818, %v1013
        %v1038 = vsub.f32 %v822, %v976
        %v1039 = vsub.f32 %v824, %v1013
        %v1040 = vsub.f32 %v828, %v976
        %v1041 = vsub.f32 %v830, %v1013
        %v1042 = vsub.f32 %v834, %v976
        %v1043 = vsub.f32 %v836, %v1013
        %v1044 = vsub.f32 %v840, %v976
        %v1045 = vsub.f32 %v842, %v1013
        %v1046 = vsub.f32 %v846, %v976
        %v1047 = vsub.f32 %v848, %v1013
        %v1048 = vsub.f32 %v852, %v976
        %v1049 = vsub.f32 %v854, %v1013
        %v1050 = vsub.f32 %v858, %v976
        %v1051 = vsub.f32 %v860, %v1013
        %v1052 = vsub.f32 %v864, %v976
        %v1053 = vsub.f32 %v866, %v1013
        %v1054 = vsub.f32 %v870, %v976
        %v1055 = vsub.f32 %v872, %v1013
        %v1056 = vsub.f32 %v876, %v976
        %v1057 = vsub.f32 %v878, %v1013
        %v1058 = vsub.f32 %v882, %v976
        %v1059 = vsub.f32 %v884, %v1013
        %v1060 = vsub.f32 %v888, %v976
        %v1061 = vsub.f32 %v890, %v1013
        %v1062 = vsub.f32 %v894, %v976
        %v1063 = vsub.f32 %v896, %v1013
        %v1064 = vsub.f32 %v900, %v976
        %v1065 = vsub.f32 %v902, %v1013
        %v1066 = vsub.f32 %v906, %v976
        %v1067 = vsub.f32 %v908, %v1013
        %v1068 = vsub.f32 %v912, %v976
        %v1069 = vsub.f32 %v914, %v1013
        %v1070 = vsub.f32 %v918, %v976
        %v1071 = vsub.f32 %v920, %v1013
        %v1072 = vsub.f32 %v924, %v976
        %v1073 = vsub.f32 %v926, %v1013
        %v1074 = vsub.f32 %v930, %v976
        %v1075 = vsub.f32 %v932, %v1013
        %v1076 = vsub.f32 %v936, %v976
        %v1077 = vsub.f32 %v938, %v1013
        %v1078 = vmul.f32 %v1014, 1.442695
        %v1079 = vpow.pop %v1078
        %v1080 = vmul.f32 %v1015, 1.442695
        %v1081 = vpow.pop %v1080
        %v1082 = vmul.f32 %v1016, 1.442695
        %v1083 = vpow.pop %v1082
        %v1084 = vmul.f32 %v1017, 1.442695
        %v1085 = vpow.pop %v1084
        %v1086 = vmul.f32 %v1018, 1.442695
        %v1087 = vpow.pop %v1086
        %v1088 = vmul.f32 %v1019, 1.442695
        %v1089 = vpow.pop %v1088
        %v1090 = vmul.f32 %v1020, 1.442695
        %v1091 = vpow.pop %v1090
        %v1092 = vmul.f32 %v1021, 1.442695
        %v1093 = vpow.pop %v1092
        %v1094 = vmul.f32 %v1022, 1.442695
        %v1095 = vpow.pop %v1094
        %v1096 = vmul.f32 %v1023, 1.442695
        %v1097 = vpow.pop %v1096
        %v1098 = vmul.f32 %v1024, 1.442695
        %v1099 = vpow.pop %v1098
        %v1100 = vmul.f32 %v1025, 1.442695
        %v1101 = vpow.pop %v1100
        %v1102 = vmul.f32 %v1026, 1.442695
        %v1103 = vpow.pop %v1102
        %v1104 = vmul.f32 %v1027, 1.442695
        %v1105 = vpow.pop %v1104
        %v1106 = vmul.f32 %v1028, 1.442695
        %v1107 = vpow.pop %v1106
        %v1108 = vmul.f32 %v1029, 1.442695
        %v1109 = vpow.pop %v1108
        %v1110 = vmul.f32 %v1030, 1.442695
        %v1111 = vpow.pop %v1110
        %v1112 = vmul.f32 %v1031, 1.442695
        %v1113 = vpow.pop %v1112
        %v1114 = vmul.f32 %v1032, 1.442695
        %v1115 = vpow.pop %v1114
        %v1116 = vmul.f32 %v1033, 1.442695
        %v1117 = vpow.pop %v1116
        %v1118 = vmul.f32 %v1034, 1.442695
        %v1119 = vpow.pop %v1118
        %v1120 = vmul.f32 %v1035, 1.442695
        %v1121 = vpow.pop %v1120
        %v1122 = vmul.f32 %v1036, 1.442695
        %v1123 = vpow.pop %v1122
        %v1124 = vmul.f32 %v1037, 1.442695
        %v1125 = vpow.pop %v1124
        %v1126 = vmul.f32 %v1038, 1.442695
        %v1127 = vpow.pop %v1126
        %v1128 = vmul.f32 %v1039, 1.442695
        %v1129 = vpow.pop %v1128
        %v1130 = vmul.f32 %v1040, 1.442695
        %v1131 = vpow.pop %v1130
        %v1132 = vmul.f32 %v1041, 1.442695
        %v1133 = vpow.pop %v1132
        %v1134 = vmul.f32 %v1042, 1.442695
        %v1135 = vpow.pop %v1134
        %v1136 = vmul.f32 %v1043, 1.442695
        %v1137 = vpow.pop %v1136
        %v1138 = vmul.f32 %v1044, 1.442695
        %v1139 = vpow.pop %v1138
        %v1140 = vmul.f32 %v1045, 1.442695
        %v1141 = vpow.pop %v1140
        %v1142 = vmul.f32 %v1046, 1.442695
        %v1143 = vpow.pop %v1142
        %v1144 = vmul.f32 %v1047, 1.442695
        %v1145 = vpow.pop %v1144
        %v1146 = vmul.f32 %v1048, 1.442695
        %v1147 = vpow.pop %v1146
        %v1148 = vmul.f32 %v1049, 1.442695
        %v1149 = vpow.pop %v1148
        %v1150 = vmul.f32 %v1050, 1.442695
        %v1151 = vpow.pop %v1150
        %v1152 = vmul.f32 %v1051, 1.442695
        %v1153 = vpow.pop %v1152
        %v1154 = vmul.f32 %v1052, 1.442695
        %v1155 = vpow.pop %v1154
        %v1156 = vmul.f32 %v1053, 1.442695
        %v1157 = vpow.pop %v1156
        %v1158 = vmul.f32 %v1054, 1.442695
        %v1159 = vpow.pop %v1158
        %v1160 = vmul.f32 %v1055, 1.442695
        %v1161 = vpow.pop %v1160
        %v1162 = vmul.f32 %v1056, 1.442695
        %v1163 = vpow.pop %v1162
        %v1164 = vmul.f32 %v1057, 1.442695
        %v1165 = vpow.pop %v1164
        %v1166 = vmul.f32 %v1058, 1.442695
        %v1167 = vpow.pop %v1166
        %v1168 = vmul.f32 %v1059, 1.442695
        %v1169 = vpow.pop %v1168
        %v1170 = vmul.f32 %v1060, 1.442695
        %v1171 = vpow.pop %v1170
        %v1172 = vmul.f32 %v1061, 1.442695
        %v1173 = vpow.pop %v1172
        %v1174 = vmul.f32 %v1062, 1.442695
        %v1175 = vpow.pop %v1174
        %v1176 = vmul.f32 %v1063, 1.442695
        %v1177 = vpow.pop %v1176
        %v1178 = vmul.f32 %v1064, 1.442695
        %v1179 = vpow.pop %v1178
        %v1180 = vmul.f32 %v1065, 1.442695
        %v1181 = vpow.pop %v1180
        %v1182 = vmul.f32 %v1066, 1.442695
        %v1183 = vpow.pop %v1182
        %v1184 = vmul.f32 %v1067, 1.442695
        %v1185 = vpow.pop %v1184
        %v1186 = vmul.f32 %v1068, 1.442695
        %v1187 = vpow.pop %v1186
        %v1188 = vmul.f32 %v1069, 1.442695
        %v1189 = vpow.pop %v1188
        %v1190 = vmul.f32 %v1070, 1.442695
        %v1191 = vpow.pop %v1190
        %v1192 = vmul.f32 %v1071, 1.442695
        %v1193 = vpow.pop %v1192
        %v1194 = vmul.f32 %v1072, 1.442695
        %v1195 = vpow.pop %v1194
        %v1196 = vmul.f32 %v1073, 1.442695
        %v1197 = vpow.pop %v1196
        %v1198 = vmul.f32 %v1074, 1.442695
        %v1199 = vpow.pop %v1198
        %v1200 = vmul.f32 %v1075, 1.442695
        %v1201 = vpow.pop %v1200
        %v1202 = vmul.f32 %v1076, 1.442695
        %v1203 = vpow.pop %v1202
        %v1204 = vmul.f32 %v1077, 1.442695
        %v1205 = vpow.pop %v1204
        %v1206 = vadd.f32 %v1079, %v1083
        %v1207 = vadd.f32 %v1206, %v1087
        %v1208 = vadd.f32 %v1207, %v1091
        %v1209 = vadd.f32 %v1208, %v1095
        %v1210 = vadd.f32 %v1209, %v1099
        %v1211 = vadd.f32 %v1210, %v1103
        %v1212 = vadd.f32 %v1211, %v1107
        %v1213 = vadd.f32 %v1212, %v1111
        %v1214 = vadd.f32 %v1213, %v1115
        %v1215 = vadd.f32 %v1214, %v1119
        %v1216 = vadd.f32 %v1215, %v1123
        %v1217 = vadd.f32 %v1216, %v1127
        %v1218 = vadd.f32 %v1217, %v1131
        %v1219 = vadd.f32 %v1218, %v1135
        %v1220 = vadd.f32 %v1219, %v1139
        %v1221 = vadd.f32 %v1220, %v1143
        %v1222 = vadd.f32 %v1221, %v1147
        %v1223 = vadd.f32 %v1222, %v1151
        %v1224 = vadd.f32 %v1223, %v1155
        %v1225 = vadd.f32 %v1224, %v1159
        %v1226 = vadd.f32 %v1225, %v1163
        %v1227 = vadd.f32 %v1226, %v1167
        %v1228 = vadd.f32 %v1227, %v1171
        %v1229 = vadd.f32 %v1228, %v1175
        %v1230 = vadd.f32 %v1229, %v1179
        %v1231 = vadd.f32 %v1230, %v1183
        %v1232 = vadd.f32 %v1231, %v1187
        %v1233 = vadd.f32 %v1232, %v1191
        %v1234 = vadd.f32 %v1233, %v1195
        %v1235 = vadd.f32 %v1234, %v1199
        %v1236 = vadd.f32 %v1235, %v1203
        %v1237 = vrot.slane %v1236, 4
        %v1238 = vadd.f32 %v1236, %v1237
        %v1239 = vrot.slane %v1238, 2
        %v1240 = vadd.f32 %v1238, %v1239
        %v1241 = vrot.slane %v1240, 1
        %v1242 = vadd.f32 %v1240, %v1241
        %v1243 = vadd.f32 %v1081, %v1085
        %v1244 = vadd.f32 %v1243, %v1089
        %v1245 = vadd.f32 %v1244, %v1093
        %v1246 = vadd.f32 %v1245, %v1097
        %v1247 = vadd.f32 %v1246, %v1101
        %v1248 = vadd.f32 %v1247, %v1105
        %v1249 = vadd.f32 %v1248, %v1109
        %v1250 = vadd.f32 %v1249, %v1113
        %v1251 = vadd.f32 %v1250, %v1117
        %v1252 = vadd.f32 %v1251, %v1121
        %v1253 = vadd.f32 %v1252, %v1125
        %v1254 = vadd.f32 %v1253, %v1129
        %v1255 = vadd.f32 %v1254, %v1133
        %v1256 = vadd.f32 %v1255, %v1137
        %v1257 = vadd.f32 %v1256, %v1141
        %v1258 = vadd.f32 %v1257, %v1145
        %v1259 = vadd.f32 %v1258, %v1149
        %v1260 = vadd.f32 %v1259, %v1153
        %v1261 = vadd.f32 %v1260, %v1157
        %v1262 = vadd.f32 %v1261, %v1161
        %v1263 = vadd.f32 %v1262, %v1165
        %v1264 = vadd.f32 %v1263, %v1169
        %v1265 = vadd.f32 %v1264, %v1173
        %v1266 = vadd.f32 %v1265, %v1177
        %v1267 = vadd.f32 %v1266, %v1181
        %v1268 = vadd.f32 %v1267, %v1185
        %v1269 = vadd.f32 %v1268, %v1189
        %v1270 = vadd.f32 %v1269, %v1193
        %v1271 = vadd.f32 %v1270, %v1197
        %v1272 = vadd.f32 %v1271, %v1201
        %v1273 = vadd.f32 %v1272, %v1205
        %v1274 = vrot.slane %v1273, 4
        %v1275 = vadd.f32 %v1273, %v1274
        %v1276 = vrot.slane %v1275, 2
        %v1277 = vadd.f32 %v1275, %v1276
        %v1278 = vrot.slane %v1277, 1
        %v1279 = vadd.f32 %v1277, %v1278
        %v1280 = vpack.c.bf16 %v1083, %v1079
        %v1281 = vpack.c.bf16 %v1085, %v1081
        %v1282 = vpack.c.bf16 %v1091, %v1087
        %v1283 = vpack.c.bf16 %v1093, %v1089
        %v1284 = vpack.c.bf16 %v1099, %v1095
        %v1285 = vpack.c.bf16 %v1101, %v1097
        %v1286 = vpack.c.bf16 %v1107, %v1103
        %v1287 = vpack.c.bf16 %v1109, %v1105
        %v1288 = vpack.c.bf16 %v1115, %v1111
        %v1289 = vpack.c.bf16 %v1117, %v1113
        %v1290 = vpack.c.bf16 %v1123, %v1119
        %v1291 = vpack.c.bf16 %v1125, %v1121
        %v1292 = vpack.c.bf16 %v1131, %v1127
        %v1293 = vpack.c.bf16 %v1133, %v1129
        %v1294 = vpack.c.bf16 %v1139, %v1135
        %v1295 = vpack.c.bf16 %v1141, %v1137
        %v1296 = vpack.c.bf16 %v1147, %v1143
        %v1297 = vpack.c.bf16 %v1149, %v1145
        %v1298 = vpack.c.bf16 %v1155, %v1151
        %v1299 = vpack.c.bf16 %v1157, %v1153
        %v1300 = vpack.c.bf16 %v1163, %v1159
        %v1301 = vpack.c.bf16 %v1165, %v1161
        %v1302 = vpack.c.bf16 %v1171, %v1167
        %v1303 = vpack.c.bf16 %v1173, %v1169
        %v1304 = vpack.c.bf16 %v1179, %v1175
        %v1305 = vpack.c.bf16 %v1181, %v1177
        %v1306 = vpack.c.bf16 %v1187, %v1183
        %v1307 = vpack.c.bf16 %v1189, %v1185
        %v1308 = vpack.c.bf16 %v1195, %v1191
        %v1309 = vpack.c.bf16 %v1197, %v1193
        %v1310 = vpack.c.bf16 %v1203, %v1199
        %v1311 = vpack.c.bf16 %v1205, %v1201
        %v1312 = vld [vmem:[#allocation3] sm:$0xf]
        %v1315 = vunpack.c.l.s4 1983009808
        %v1316 = vunpack.c.0.s8 %v1315
        %v1317 = vlaneseq
        %v1318 = vshrl.u32 %v1317, 7
        %v1319 = vsub.s32 %v1316, %v1318
        %v1320 = vrot.slane %v1312, %v1319
        %v1321 = vcombine.high %v1320, %v1320
        %1324 = vmatprep.subr.bf16.mxu0 %v1281
        %1325 = vmatpush1.bf16.msra.mxu0 %v1280
        %1326 = vmatprep.subr.bf16.mxu0 %v1283
        %1327 = vmatpush1.bf16.msra.mxu0 %v1282
        %1328 = vmatprep.subr.bf16.mxu0 %v1285
        %1329 = vmatpush1.bf16.msra.mxu0 %v1284
        %1330 = vmatprep.subr.bf16.mxu0 %v1287
        %1331 = vmatpush1.bf16.msra.mxu0 %v1286
        %1332 = vmatprep.subr.bf16.mxu0 %v1289
        %1333 = vmatpush1.bf16.msra.mxu0 %v1288
        %1334 = vmatprep.subr.bf16.mxu0 %v1291
        %1335 = vmatpush1.bf16.msra.mxu0 %v1290
        %1336 = vmatprep.subr.bf16.mxu0 %v1293
        %1337 = vmatpush1.bf16.msra.mxu0 %v1292
        %1338 = vmatprep.subr.bf16.mxu0 %v1295
        %1339 = vmatpush1.bf16.msra.mxu0 %v1294
        %1340 = vmatprep.subr.bf16.mxu0 %v1297
        %1341 = vmatpush1.bf16.msra.mxu0 %v1296
        %1342 = vmatprep.subr.bf16.mxu0 %v1299
        %1343 = vmatpush1.bf16.msra.mxu0 %v1298
        %1344 = vmatprep.subr.bf16.mxu0 %v1301
        %1345 = vmatpush1.bf16.msra.mxu0 %v1300
        %1346 = vmatprep.subr.bf16.mxu0 %v1303
        %1347 = vmatpush1.bf16.msra.mxu0 %v1302
        %1348 = vmatprep.subr.bf16.mxu0 %v1305
        %1349 = vmatpush1.bf16.msra.mxu0 %v1304
        %1350 = vmatprep.subr.bf16.mxu0 %v1307
        %1351 = vmatpush1.bf16.msra.mxu0 %v1306
        %1352 = vmatprep.subr.bf16.mxu0 %v1309
        %1353 = vmatpush1.bf16.msra.mxu0 %v1308
        %1354 = vmatprep.subr.bf16.mxu0 %v1311
        %1355 = vmatpush1.bf16.msra.mxu0 %v1310
        %1356 = vmatprep.mubr.bf16.mxu0 %v1321
        %1357 = vmatmul.mubr.bf16.gmra.mrb[0].mxu0 %v1320
        %v1358 = vpop.f32.mrb[0].mxu0
        %v1359 = vadd.f32 0.0, %v1358
        %v1360 = vpop.f32.mrb[0].mxu0
        %v1361 = vadd.f32 0.0, %v1360
        %v1362 = vpop.f32.mrb[0].mxu0
        %v1363 = vpop.f32.mrb[0].mxu0
        %1364 = vdwg.mxu0
        %v1365 = vrcp.pop %v1242
        %v1366 = vrcp.pop %v1279
        %v1367 = vmul.f32 %v1359, %v1365
        %v1368 = vmul.f32 %v1361, %v1366
        %v1370 = vadd.f32 %v1367, %v429
        %v1371 = vadd.f32 %v1368, %v432
        %v1374 = vcombine.low %v1370, %v1371
        %1376 = vst [vmem:[%s240] sm:$0xff] %v1374
        %s1377 = sand.u32 %s133, 1
        %s1378 = scalar_lea.sflag [#allocation6], %s1377
        %s1379 = sand.u32 %s133, 1
        %s1380 = smul.addr %s1379, 8
        %s1381 = scalar_lea.vmem [#allocation9], %s1380
        // Predicated region
        $region49: #{tpu_custom_call.1} parent=35 // pred_check
          %p1382 = pneg %p143
        $region50: #{tpu_custom_call.1} parent=35 // pred_check_branch
          %1384 = sbr.rel (%p1382) target = $region52
        $region51: #{tpu_custom_call.1} parent=35 // pred_region
          %s1385 = smul.u32 2, %s27
          %s1387 = ssub.s32 128, 128
          %1388 = vsyncadd %s1378, %s1387
          %s1389 = smul.addr %s26, 2
          %s1390 = sadd.s32 %s1385, %s1389
          %s1391 = smul.addr %s1390, 64
          %s1392 = scalar_lea.hbm %s4, %s1391
          %s1394 = sshll.u32 %s1381, 4
          %s1395 = int_to_ptr.vmem [resolvable:$true] %s1394
          %1397 = dma.vmem_to_hbm [thread:$0]  %s1395, 128, %s1392, %s1378
        $region52: #{tpu_custom_call.1} parent=35 // pred_fallthru
          _
      $region36: #{tpu_custom_call.1} parent=5 // pred_fallthru
        _
      %p1398 = scmp.le.s32.totalorder 2, %s17
      // Predicated region
      $region53: #{tpu_custom_call.1} parent=5 // pred_check
        %p1399 = pneg %p1398
      $region54: #{tpu_custom_call.1} parent=5 // pred_check_branch
        %1401 = sbr.rel (%p1399) target = $region56
      $region55: #{tpu_custom_call.1} parent=5 // pred_region
        %s1402 = ssub.s32 %s17, 2
        // Predicated region
        $region57: #{tpu_custom_call.1} parent=55 // pred_check
          %p1403 = pneg %p149
        $region58: #{tpu_custom_call.1} parent=55 // pred_check_branch
          %1405 = sbr.rel (%p1403) target = $region60
        $region59: #{tpu_custom_call.1} parent=55 // pred_region
          %s1406 = sand.u32 %s134, 1
          %s1407 = scalar_lea.sflag [#allocation6], %s1406
          %s1408 = sand.u32 %s134, 1
          %s1409 = smul.addr %s1408, 8
          %s1410 = scalar_lea.vmem [#allocation9], %s1409
          %1411 = dma.done %s1407, 128
        $region60: #{tpu_custom_call.1} parent=55 // pred_fallthru
          _
      $region56: #{tpu_custom_call.1} parent=5 // pred_fallthru
        _
    $region6: #{tpu_custom_call.1} parent=1 // loop_footer
      %s21 = sadd.s32 1, %s17
    $region7: #{tpu_custom_call.1} parent=1 // loop_footer_branch
      %16 = sbr.rel target = $region3
    $region8: #{tpu_custom_call.1} parent=1 // loop_exit
      _
    %1412 = vsyncpa [#allocation5], 1
    %s1413 = scalar_lea.sflag [#allocation5], 1
    %1414 = vsyncpa %s1413, 1
    %1415 = vsyncpa [#allocation8], 1
    %1416 = vsyncpa [#allocation6], 1
    %s1417 = scalar_lea.sflag [#allocation6], 1
    %1418 = vsyncpa %s1417, 1

</llo_original>
